<compile_context>
chip_gen: v7x
topology: tpu7x:2x2x1
jax: 0.10.0
libtpu: 0.0.40
codegen_flags: <defaults>
</compile_context>

<pallas_src>
import math
import jax
import jax.numpy as jnp
from jax.experimental import pallas as pl
from jax.experimental.pallas import tpu as pltpu


def join_decoder_kernel(x_ref, w1_ref, b1_ref, w2t_ref, b2_ref, out_ref, acc_ref):
    # Grid = (decoder d, K tile k).  Leading group axis is squeezed, so refs:
    #   x:  (B, tk) bf16      w1: (tk, H) bf16     b1: (1, H) f32
    #   w2t:(2, H)  f32       b2: (1, 2)  f32      out:(B, 2) f32
    #   acc:(B, H)  f32 scratch (persists across k)
    k = pl.program_id(1)

    @pl.when(k == 0)
    def _():
        acc_ref[...] = jnp.zeros_like(acc_ref)

    # Partial first-layer matmul on this K slab, f32 MXU accumulation.
    acc_ref[...] += jnp.dot(x_ref[...], w1_ref[...],
                            preferred_element_type=jnp.float32)

    @pl.when(k == pl.num_programs(1) - 1)
    def _():
        # Bias + ReLU in f32 (v5e-friendly), then the tiny H->2 layer on the
        # VPU (broadcast multiply) + XLU (lane reduction) instead of the MXU.
        h = jnp.maximum(acc_ref[...] + b1_ref[...], 0.0)          # (B, H)
        w2t = w2t_ref[...]                                        # (2, H)
        l0 = jnp.sum(h * w2t[0:1, :], axis=-1, keepdims=True)     # (B, 1)
        l1 = jnp.sum(h * w2t[1:2, :], axis=-1, keepdims=True)     # (B, 1)
        logits = jnp.concatenate([l0, l1], axis=-1) + b2_ref[...]
        out_ref[...] = logits.astype(out_ref.dtype)


def prepare_join_decoder_params(kpid_params, logd_params):
    """One-time packing of the two decoders' params into the kernel layout.

    Do this at init (or cache it); it must NOT run on every forward call —
    re-casting W1 in HBM per call is ~3x the kernel's own W1 traffic.
    """
    w1 = jnp.stack([kpid_params[0], logd_params[0]]).astype(jnp.bfloat16)    # (2, TD, H)
    b1 = jnp.stack([kpid_params[1], logd_params[1]]).astype(jnp.float32)     # (2, 1, H)
    # W2 pre-transposed so H sits in lanes for the in-kernel VPU path.
    w2t = jnp.stack([kpid_params[2].T, logd_params[2].T]).astype(jnp.float32)  # (2, 2, H)
    b2 = jnp.stack([kpid_params[3], logd_params[3]]).astype(jnp.float32)     # (2, 1, 2)
    return w1, b1, w2t, b2


def _choose_k_tile(TD, H, itemsize=2, slab_budget_bytes=16 << 20):
    """Largest K tile that (a) divides TD, (b) is a multiple of 128, and
    (c) keeps the double-buffered W1 slab under ~slab_budget_bytes.
    Sized so it also fits v7x's 64 MiB/TC VMEM with headroom."""
    max_tk = max(128, slab_budget_bytes // (2 * H * itemsize))
    best = None
    tk = 128
    while tk <= min(TD, max_tk):
        if TD % tk == 0:
            best = tk
        tk += 128
    if best is None:
        best = TD  # full-extent K block is always a legal BlockSpec
    return best


def join_decoder(kpi_re, log_re, packed_params, *, tk=None):
    """kpi_re, log_re: (B, T, D) float32.  packed_params from
    prepare_join_decoder_params.  Returns (kpi_logits, log_logits): (B, 2) f32."""
    B, T, D = kpi_re.shape
    assert log_re.shape == (B, T, D)
    TD = T * D
    w1, b1, w2t, b2 = packed_params
    assert w1.shape[1] == TD
    H = w1.shape[2]

    if tk is None:
        tk = _choose_k_tile(TD, H)
    assert TD % tk == 0
    n_k = TD // tk

    # Activations are tiny relative to W1; casting them per call is cheap.
    x = jnp.stack([kpi_re.reshape(B, TD),
                   log_re.reshape(B, TD)]).astype(jnp.bfloat16)   # (2, B, TD)

    # Explicit VMEM budget: double-buffered bf16 X/W1 tiles + small f32 operands
    # + the accumulator, with 2x headroom, capped well under v7x's 64 MiB/TC.
    est = (2 * (B * tk + tk * H) * 2
           + 2 * (H + 2 * H + 2 + B * 2) * 4
           + B * H * 4)
    vmem_limit = int(min(48 << 20, max(2 * est, 4 << 20)))

    out = pl.pallas_call(
        join_decoder_kernel,
        out_shape=jax.ShapeDtypeStruct((2, B, 2), jnp.float32),
        grid=(2, n_k),
        in_specs=[
            pl.BlockSpec((None, B, tk), lambda d, k: (d, 0, k)),   # x
            pl.BlockSpec((None, tk, H), lambda d, k: (d, k, 0)),   # w1
            pl.BlockSpec((None, 1, H),  lambda d, k: (d, 0, 0)),   # b1
            pl.BlockSpec((None, 2, H),  lambda d, k: (d, 0, 0)),   # w2^T
            pl.BlockSpec((None, 1, 2),  lambda d, k: (d, 0, 0)),   # b2
        ],
        out_specs=pl.BlockSpec((None, B, 2), lambda d, k: (d, 0, 0)),
        scratch_shapes=[pltpu.VMEM((B, H), jnp.float32)],
        compiler_params=pltpu.CompilerParams(
            dimension_semantics=("parallel", "arbitrary"),
            vmem_limit_bytes=vmem_limit),
    )(x, w1, b1, w2t, b2)

    return out[0], out[1]


def init_linear(key, fan_in, fan_out):
    # Deterministic init mimicking torch.nn.Linear default (uniform +-1/sqrt(fan_in)).
    kw, kb = jax.random.split(key)
    bound = 1.0 / math.sqrt(fan_in)
    w = jax.random.uniform(kw, (fan_in, fan_out), jnp.float32, -bound, bound)
    b = jax.random.uniform(kb, (1, fan_out), jnp.float32, -bound, bound)
    return w, b


def init_decoder_params(key, encoded_dim, T):
    d_in = encoded_dim * T
    hidden = d_in // 2
    k1, k2 = jax.random.split(key)
    w1, b1 = init_linear(k1, d_in, hidden)
    w2, b2 = init_linear(k2, hidden, 2)
    return (w1, b1, w2, b2)


if __name__ == "__main__":
    B, T, D = 2, 8, 32   # batch, window length, encoded_dim  (T*D=256, H=128)

    root = jax.random.PRNGKey(0)
    k_kpi_x, k_log_x, k_kpid, k_logd = jax.random.split(root, 4)

    kpi_re = jax.random.normal(k_kpi_x, (B, T, D), jnp.float32)
    log_re = jax.random.normal(k_log_x, (B, T, D), jnp.float32)

    kpid_params = init_decoder_params(k_kpid, D, T)
    logd_params = init_decoder_params(k_logd, D, T)

    # One-time packing (would be cached on the module in a real deployment).
    packed = prepare_join_decoder_params(kpid_params, logd_params)

    # tk=128 at this toy size -> grid=(2, 2): exercises the K accumulation path.
    kpi_logits, log_logits = join_decoder(kpi_re, log_re, packed, tk=128)
    jax.block_until_ready((kpi_logits, log_logits))
    assert kpi_logits.shape == log_logits.shape == (B, 2)
    assert kpi_logits.dtype == log_logits.dtype == jnp.float32

    # Pure-JAX reference with the same numerics: bf16 first-layer operands with
    # f32 accumulation, f32 bias/ReLU, f32 second layer.
    def ref_decoder(x, params):
        w1, b1, w2, b2 = params
        xb = x.reshape(x.shape[0], -1).astype(jnp.bfloat16)
        h = jnp.dot(xb, w1.astype(jnp.bfloat16),
                    preferred_element_type=jnp.float32) + b1
        h = jnp.maximum(h, 0.0)
        return jnp.dot(h, w2.astype(jnp.float32),
                       preferred_element_type=jnp.float32) + b2

    ref_kpi = ref_decoder(kpi_re, kpid_params)
    ref_log = ref_decoder(log_re, logd_params)
    assert jnp.allclose(kpi_logits, ref_kpi, atol=2e-2, rtol=2e-2)
    assert jnp.allclose(log_logits, ref_log, atol=2e-2, rtol=2e-2)

    print("KERNEL_OK")
</pallas_src>

<mosaic_0001>
module attributes {stable_mosaic.version = 11 : i64} {
  func.func @join_decoder_kernel(%arg0: i32, %arg1: i32, %arg2: memref<1x2x128xbf16, #tpu.memory_space<vmem>>, %arg3: memref<1x128x128xbf16, #tpu.memory_space<vmem>>, %arg4: memref<1x1x128xf32, #tpu.memory_space<vmem>>, %arg5: memref<1x2x128xf32, #tpu.memory_space<vmem>>, %arg6: memref<1x1x2xf32, #tpu.memory_space<vmem>>, %arg7: memref<1x2x2xf32, #tpu.memory_space<vmem>>, %arg8: memref<2x128xf32, #tpu.memory_space<vmem>>) attributes {dimension_semantics = [#tpu.dimension_semantics<parallel>, #tpu.dimension_semantics<arbitrary>], iteration_bounds = array<i64: 2, 2>, scalar_prefetch = 0 : i64, scratch_operands = 1 : i64, tpu.core_type = #tpu.core_type<tc>, window_params = [{transform_indices = @transform_0, window_bounds = array<i64: 1, 2, 128>}, {transform_indices = @transform_1, window_bounds = array<i64: 1, 128, 128>}, {transform_indices = @transform_2, window_bounds = array<i64: 1, 1, 128>}, {transform_indices = @transform_3, window_bounds = array<i64: 1, 2, 128>}, {transform_indices = @transform_4, window_bounds = array<i64: 1, 1, 2>}, {transform_indices = @transform_5, window_bounds = array<i64: 1, 2, 2>}]} {
    %c0_i32 = arith.constant 0 : i32
    %0 = arith.cmpi eq, %arg1, %c0_i32 : i32
    %1 = arith.extui %0 : i1 to i32
    %c0_i32_0 = arith.constant 0 : i32
    %2 = arith.cmpi ne, %1, %c0_i32_0 : i32
    scf.if %2 {
      %cst_11 = arith.constant 0.000000e+00 : f32
      %14 = vector.broadcast %cst_11 : f32 to vector<2x128xf32>
      %c0_12 = arith.constant 0 : index
      %c0_13 = arith.constant 0 : index
      %15 = vector.load %arg8[%c0_12, %c0_13] : memref<2x128xf32, #tpu.memory_space<vmem>>, vector<2x128xf32>
      tpu.vector_store %arg8[%c0_12, %c0_13], %14 {strides = array<i32>} : memref<2x128xf32, #tpu.memory_space<vmem>>, vector<2x128xf32>,
    } else {
    }
    %c0 = arith.constant 0 : index
    %c0_1 = arith.constant 0 : index
    %3 = vector.load %arg8[%c0, %c0_1] : memref<2x128xf32, #tpu.memory_space<vmem>>, vector<2x128xf32>
    %c0_2 = arith.constant 0 : index
    %c0_3 = arith.constant 0 : index
    %c0_4 = arith.constant 0 : index
    %4 = vector.load %arg2[%c0_2, %c0_3, %c0_4] : memref<1x2x128xbf16, #tpu.memory_space<vmem>>, vector<1x2x128xbf16>
    %5 = vector.shape_cast %4 : vector<1x2x128xbf16> to vector<2x128xbf16>
    %c0_5 = arith.constant 0 : index
    %c0_6 = arith.constant 0 : index
    %c0_7 = arith.constant 0 : index
    %6 = vector.load %arg3[%c0_5, %c0_6, %c0_7] : memref<1x128x128xbf16, #tpu.memory_space<vmem>>, vector<1x128x128xbf16>
    %7 = vector.shape_cast %6 : vector<1x128x128xbf16> to vector<128x128xbf16>
    %cst = arith.constant dense<0.000000e+00> : vector<2x128xf32>
    %8 = tpu.matmul %5, %7, %cst {dimension_numbers = #tpu.dot_dimension_numbers<[1], [0], [0], [1], [0, 0, 1, 1], [], []>} : vector<2x128xbf16>, vector<128x128xbf16>, vector<2x128xf32> -> vector<2x128xf32>
    %9 = arith.addf %3, %8 : vector<2x128xf32>
    %c0_8 = arith.constant 0 : index
    %c0_9 = arith.constant 0 : index
    %10 = vector.load %arg8[%c0_8, %c0_9] : memref<2x128xf32, #tpu.memory_space<vmem>>, vector<2x128xf32>
    tpu.vector_store %arg8[%c0_8, %c0_9], %9 {strides = array<i32>} : memref<2x128xf32, #tpu.memory_space<vmem>>, vector<2x128xf32>,
    %c1_i32 = arith.constant 1 : i32
    %11 = arith.cmpi eq, %arg1, %c1_i32 : i32
    %12 = arith.extui %11 : i1 to i32
    %c0_i32_10 = arith.constant 0 : i32
    %13 = arith.cmpi ne, %12, %c0_i32_10 : i32
    scf.if %13 {
      %c0_11 = arith.constant 0 : index
      %c0_12 = arith.constant 0 : index
      %14 = vector.load %arg8[%c0_11, %c0_12] : memref<2x128xf32, #tpu.memory_space<vmem>>, vector<2x128xf32>
      %c0_13 = arith.constant 0 : index
      %c0_14 = arith.constant 0 : index
      %c0_15 = arith.constant 0 : index
      %15 = vector.load %arg4[%c0_13, %c0_14, %c0_15] : memref<1x1x128xf32, #tpu.memory_space<vmem>>, vector<1x1x128xf32>
      %16 = vector.shape_cast %15 : vector<1x1x128xf32> to vector<1x128xf32>
      %17 = vector.broadcast %16 : vector<1x128xf32> to vector<2x128xf32>
      %18 = arith.addf %14, %17 : vector<2x128xf32>
      %cst_16 = arith.constant 0.000000e+00 : f32
      %19 = vector.broadcast %cst_16 : f32 to vector<2x128xf32>
      %20 = arith.maximumf %18, %19 : vector<2x128xf32>
      %c0_17 = arith.constant 0 : index
      %c0_18 = arith.constant 0 : index
      %c0_19 = arith.constant 0 : index
      %21 = vector.load %arg5[%c0_17, %c0_18, %c0_19] : memref<1x2x128xf32, #tpu.memory_space<vmem>>, vector<1x2x128xf32>
      %22 = vector.shape_cast %21 : vector<1x2x128xf32> to vector<2x128xf32>
      %23 = vector.extract_strided_slice %22 {offsets = [0, 0], sizes = [1, 128], strides = [1, 1]} : vector<2x128xf32> to vector<1x128xf32>
      %24 = vector.broadcast %23 : vector<1x128xf32> to vector<2x128xf32>
      %25 = arith.mulf %20, %24 : vector<2x128xf32>
      %cst_20 = arith.constant dense<0.000000e+00> : vector<2xf32>
      %26 = vector.multi_reduction <add>, %25, %cst_20 [1] : vector<2x128xf32> to vector<2xf32>
      %27 = vector.shape_cast %26 : vector<2xf32> to vector<2x1xf32>
      %28 = vector.extract_strided_slice %22 {offsets = [1, 0], sizes = [1, 128], strides = [1, 1]} : vector<2x128xf32> to vector<1x128xf32>
      %29 = vector.broadcast %28 : vector<1x128xf32> to vector<2x128xf32>
      %30 = arith.mulf %20, %29 : vector<2x128xf32>
      %cst_21 = arith.constant dense<0.000000e+00> : vector<2xf32>
      %31 = vector.multi_reduction <add>, %30, %cst_21 [1] : vector<2x128xf32> to vector<2xf32>
      %32 = vector.shape_cast %31 : vector<2xf32> to vector<2x1xf32>
      %33 = tpu.concatenate %27, %32 in 1 : vector<2x1xf32>, vector<2x1xf32> -> vector<2x2xf32>
      %c0_22 = arith.constant 0 : index
      %c0_23 = arith.constant 0 : index
      %c0_24 = arith.constant 0 : index
      %34 = vector.load %arg6[%c0_22, %c0_23, %c0_24] : memref<1x1x2xf32, #tpu.memory_space<vmem>>, vector<1x1x2xf32>
      %35 = vector.shape_cast %34 : vector<1x1x2xf32> to vector<1x2xf32>
      %36 = vector.broadcast %35 : vector<1x2xf32> to vector<2x2xf32>
      %37 = arith.addf %33, %36 : vector<2x2xf32>
      %c0_25 = arith.constant 0 : index
      %c0_26 = arith.constant 0 : index
      %c0_27 = arith.constant 0 : index
      %38 = vector.load %arg7[%c0_25, %c0_26, %c0_27] : memref<1x2x2xf32, #tpu.memory_space<vmem>>, vector<1x2x2xf32>
      %39 = vector.shape_cast %38 : vector<1x2x2xf32> to vector<2x2xf32>
      %40 = vector.shape_cast %37 : vector<2x2xf32> to vector<1x2x2xf32>
      tpu.vector_store %arg7[%c0_25, %c0_26, %c0_27], %40 {strides = array<i32>} : memref<1x2x2xf32, #tpu.memory_space<vmem>>, vector<1x2x2xf32>,
    } else {
    }
    return
  }
  func.func @transform_0(%arg0: i32, %arg1: i32) -> (i32, i32, i32) {
    %c0_i32 = arith.constant 0 : i32
    %c0_i32_0 = arith.constant 0 : i32
    return %arg0, %c0_i32, %arg1 : i32, i32, i32
  }
  func.func @transform_1(%arg0: i32, %arg1: i32) -> (i32, i32, i32) {
    %c0_i32 = arith.constant 0 : i32
    %c0_i32_0 = arith.constant 0 : i32
    return %arg0, %arg1, %c0_i32 : i32, i32, i32
  }
  func.func @transform_2(%arg0: i32, %arg1: i32) -> (i32, i32, i32) {
    %c0_i32 = arith.constant 0 : i32
    %c0_i32_0 = arith.constant 0 : i32
    %c0_i32_1 = arith.constant 0 : i32
    return %arg0, %c0_i32, %c0_i32_0 : i32, i32, i32
  }
  func.func @transform_3(%arg0: i32, %arg1: i32) -> (i32, i32, i32) {
    %c0_i32 = arith.constant 0 : i32
    %c0_i32_0 = arith.constant 0 : i32
    %c0_i32_1 = arith.constant 0 : i32
    return %arg0, %c0_i32, %c0_i32_0 : i32, i32, i32
  }
  func.func @transform_4(%arg0: i32, %arg1: i32) -> (i32, i32, i32) {
    %c0_i32 = arith.constant 0 : i32
    %c0_i32_0 = arith.constant 0 : i32
    %c0_i32_1 = arith.constant 0 : i32
    return %arg0, %c0_i32, %c0_i32_0 : i32, i32, i32
  }
  func.func @transform_5(%arg0: i32, %arg1: i32) -> (i32, i32, i32) {
    %c0_i32 = arith.constant 0 : i32
    %c0_i32_0 = arith.constant 0 : i32
    %c0_i32_1 = arith.constant 0 : i32
    return %arg0, %c0_i32, %c0_i32_0 : i32, i32, i32
  }
}

</mosaic_0001>

<llo_original>
// kernel: tpu_custom_call.1
$region0: #{tpu_custom_call.1}
  #allocation0 [shape = 'u32[]', space=smem, size = 0x4, offset = 0x4, fixed_abs, tag = 'smem constant byte address 0x4 - core index']
  #allocation1 [shape = 'u32[144,128]{1,0:T(1,128)}', space=vmem, size = 0x12000, scoped, tag = 'internal scratch']
  #allocation2 [shape = 'f32[2,128]{1,0:T(2,128)}', space=vmem, size = 0x400, scoped, tag = 'scratch operand']
  %s0 = inlined_call_operand.hbm [shape: bf16[2,2,256], index: 0, kind: input, shape index: {}]
  %s1 = inlined_call_operand.hbm [shape: bf16[2,256,128], index: 1, kind: input, shape index: {}]
  %s2 = inlined_call_operand.vmem [shape: f32[2,1,128], index: 2, kind: input, shape index: {}]
  %s3 = inlined_call_operand.vmem [shape: f32[2,2,128], index: 3, kind: input, shape index: {}]
  %s4 = inlined_call_operand.vmem [shape: f32[2,1,2], index: 4, kind: input, shape index: {}]
  %s5 = inlined_call_operand.hbm [shape: f32[2,2,2], index: 5, kind: output, shape index: {}]
  %s6 = sld [smem:[#allocation0]]
  $region69: #{tpu_custom_call.1} parent=0
    _
  %s8 = ssub.s32 1, %s6
  %s9 = scalar_select 0, %s8, %s6
  $region1: #{tpu_custom_call.1} parent=0
    #allocation3 [shape = 'u8[1024]{0}', space=vmem, size = 0x400, scoped, tag = 'input window, operand 0']
    #allocation4 [shape = 's32[2]{0}', space=sflag, size = 0x8, scoped, tag = 'scoped memory for tpu_custom_call.1']
    #allocation5 [shape = 's32[2]{0}', space=sflag, size = 0x8, scoped, tag = 'scoped memory for tpu_custom_call.1']
    #allocation6 [shape = 'u8[65536]{0}', space=vmem, size = 0x10000, scoped, tag = 'input window, operand 1']
    #allocation7 [shape = 's32[2]{0}', space=sflag, size = 0x8, scoped, tag = 'scoped memory for tpu_custom_call.1']
    #allocation8 [shape = 'u8[2048]{0}', space=vmem, size = 0x800, scoped, tag = 'output window, operand 0']
    %10 = vsyncpa [#allocation4], 0
    %s11 = scalar_lea.sflag [#allocation4], 1
    %12 = vsyncpa %s11, 0
    %13 = vsyncpa [#allocation7], 0
    %s14 = scalar_lea.sflag [#allocation7], 1
    %15 = vsyncpa %s14, 0
    %16 = vsyncpa [#allocation5], 0
    %s17 = scalar_lea.sflag [#allocation5], 1
    %18 = vsyncpa %s17, 0
    loop: start=0, step=1, limit=6
    $region2: #{tpu_custom_call.1} parent=1 // loop_pre_header
      _
    $region3: #{tpu_custom_call.1} parent=1 // loop_header
      %s20 = sphi 0, %s24
      %p21 = scmp.ge.s32.totalorder %s20, 6
      %s27 = sphi 0, %s39
      %s28 = sphi 0, %s35
      %s29 = sphi 0, %s27
      %s30 = sphi 0, %s28
      %s31 = sphi 0, %s29
      %s32 = sphi 0, %s30
      %s44 = sphi 0, %s46
      %s47 = sphi 0, %s44
      %s48 = sphi 0, %s47
      %s64 = sphi 0, %s48
      %s72 = sphi 0, %s74
      %s75 = sphi 0, %s72
      %s76 = sphi 0, %s75
      %s92 = sphi 0, %s76
      %s98 = sphi 0, %s100
      %s101 = sphi 0, %s98
      %s102 = sphi 0, %s101
      %s118 = sphi 0, %s102
      %s124 = sphi 0, %s126
      %s127 = sphi 0, %s124
      %s128 = sphi 0, %s127
      %s144 = sphi 0, %s128
      %s150 = sphi 0, %s152
      %s153 = sphi 0, %s150
      %s154 = sphi 0, %s153
      %s170 = sphi 0, %s154
      %s176 = sphi 0, %s178
      %s179 = sphi 0, %s176
      %s180 = sphi 0, %s179
      %s196 = sphi 0, %s180
    $region4: #{tpu_custom_call.1} parent=1 // loop_header_branch
      %23 = sbr.rel (%p21) target = $region8
    $region5: #{tpu_custom_call.1} parent=1 // loop_body
      %s25 = ssub.s32 %s20, 1
      %s26 = ssub.s32 %s20, 2
      %s33 = sadd.s32 1, %s28
      %p34 = scmp.ge.s32.totalorder %s33, 2
      %s35 = scalar_select %p34, 0, %s33
      %s36 = sadd.s32 1, %s27
      %s37 = scalar_select %p34, %s36, %s27
      %p38 = scmp.ge.s32.totalorder %s37, 2
      %s39 = scalar_select %p38, 0, %s37
      %s40 = ssub.s32 %s27, %s39
      %s41 = ssub.s32 %s28, %s35
      %s42 = sor.u32 %s40, %s41
      %p43 = scmp.eq.s32.totalorder %s42, 0
      %s45 = sadd.s32 %s44, 1
      %s46 = scalar_select %p43, %s44, %s45
      %p49 = pneg %p43
      %p50 = scmp.eq.s32.totalorder %s20, 3
      %p51 = por %p49, %p50
      %p52 = scmp.ne.s32.totalorder %s44, %s47
      %p53 = scmp.eq.s32.totalorder %s20, 0
      %p54 = por %p52, %p53
      %p55 = scmp.ne.s32.totalorder %s44, %s47
      %p56 = scmp.eq.s32.totalorder %s25, 3
      %p57 = por %p55, %p56
      %p58 = scmp.ne.s32.totalorder %s47, %s48
      %p59 = scmp.eq.s32.totalorder %s25, 0
      %p60 = por %p58, %p59
      %p61 = scmp.ne.s32.totalorder %s47, %s48
      %p62 = scmp.eq.s32.totalorder %s26, 3
      %p63 = por %p61, %p62
      %p65 = scmp.ne.s32.totalorder %s48, %s64
      %p66 = scmp.eq.s32.totalorder %s26, 0
      %p67 = por %p65, %p66
      %s68 = ssub.s32 %s27, %s39
      %s69 = ssub.s32 %s28, %s35
      %s70 = sor.u32 %s68, %s69
      %p71 = scmp.eq.s32.totalorder %s70, 0
      %s73 = sadd.s32 %s72, 1
      %s74 = scalar_select %p71, %s72, %s73
      %p77 = pneg %p71
      %p78 = scmp.eq.s32.totalorder %s20, 3
      %p79 = por %p77, %p78
      %p80 = scmp.ne.s32.totalorder %s72, %s75
      %p81 = scmp.eq.s32.totalorder %s20, 0
      %p82 = por %p80, %p81
      %p83 = scmp.ne.s32.totalorder %s72, %s75
      %p84 = scmp.eq.s32.totalorder %s25, 3
      %p85 = por %p83, %p84
      %p86 = scmp.ne.s32.totalorder %s75, %s76
      %p87 = scmp.eq.s32.totalorder %s25, 0
      %p88 = por %p86, %p87
      %p89 = scmp.ne.s32.totalorder %s75, %s76
      %p90 = scmp.eq.s32.totalorder %s26, 3
      %p91 = por %p89, %p90
      %p93 = scmp.ne.s32.totalorder %s76, %s92
      %p94 = scmp.eq.s32.totalorder %s26, 0
      %p95 = por %p93, %p94
      %s96 = ssub.s32 %s27, %s39
      %p97 = scmp.eq.s32.totalorder %s96, 0
      %s99 = sadd.s32 %s98, 1
      %s100 = scalar_select %p97, %s98, %s99
      %p103 = pneg %p97
      %p104 = scmp.eq.s32.totalorder %s20, 3
      %p105 = por %p103, %p104
      %p106 = scmp.ne.s32.totalorder %s98, %s101
      %p107 = scmp.eq.s32.totalorder %s20, 0
      %p108 = por %p106, %p107
      %p109 = scmp.ne.s32.totalorder %s98, %s101
      %p110 = scmp.eq.s32.totalorder %s25, 3
      %p111 = por %p109, %p110
      %p112 = scmp.ne.s32.totalorder %s101, %s102
      %p113 = scmp.eq.s32.totalorder %s25, 0
      %p114 = por %p112, %p113
      %p115 = scmp.ne.s32.totalorder %s101, %s102
      %p116 = scmp.eq.s32.totalorder %s26, 3
      %p117 = por %p115, %p116
      %p119 = scmp.ne.s32.totalorder %s102, %s118
      %p120 = scmp.eq.s32.totalorder %s26, 0
      %p121 = por %p119, %p120
      %s122 = ssub.s32 %s27, %s39
      %p123 = scmp.eq.s32.totalorder %s122, 0
      %s125 = sadd.s32 %s124, 1
      %s126 = scalar_select %p123, %s124, %s125
      %p129 = pneg %p123
      %p130 = scmp.eq.s32.totalorder %s20, 3
      %p131 = por %p129, %p130
      %p132 = scmp.ne.s32.totalorder %s124, %s127
      %p133 = scmp.eq.s32.totalorder %s20, 0
      %p134 = por %p132, %p133
      %p135 = scmp.ne.s32.totalorder %s124, %s127
      %p136 = scmp.eq.s32.totalorder %s25, 3
      %p137 = por %p135, %p136
      %p138 = scmp.ne.s32.totalorder %s127, %s128
      %p139 = scmp.eq.s32.totalorder %s25, 0
      %p140 = por %p138, %p139
      %p141 = scmp.ne.s32.totalorder %s127, %s128
      %p142 = scmp.eq.s32.totalorder %s26, 3
      %p143 = por %p141, %p142
      %p145 = scmp.ne.s32.totalorder %s128, %s144
      %p146 = scmp.eq.s32.totalorder %s26, 0
      %p147 = por %p145, %p146
      %s148 = ssub.s32 %s27, %s39
      %p149 = scmp.eq.s32.totalorder %s148, 0
      %s151 = sadd.s32 %s150, 1
      %s152 = scalar_select %p149, %s150, %s151
      %p155 = pneg %p149
      %p156 = scmp.eq.s32.totalorder %s20, 3
      %p157 = por %p155, %p156
      %p158 = scmp.ne.s32.totalorder %s150, %s153
      %p159 = scmp.eq.s32.totalorder %s20, 0
      %p160 = por %p158, %p159
      %p161 = scmp.ne.s32.totalorder %s150, %s153
      %p162 = scmp.eq.s32.totalorder %s25, 3
      %p163 = por %p161, %p162
      %p164 = scmp.ne.s32.totalorder %s153, %s154
      %p165 = scmp.eq.s32.totalorder %s25, 0
      %p166 = por %p164, %p165
      %p167 = scmp.ne.s32.totalorder %s153, %s154
      %p168 = scmp.eq.s32.totalorder %s26, 3
      %p169 = por %p167, %p168
      %p171 = scmp.ne.s32.totalorder %s154, %s170
      %p172 = scmp.eq.s32.totalorder %s26, 0
      %p173 = por %p171, %p172
      %s174 = ssub.s32 %s27, %s39
      %p175 = scmp.eq.s32.totalorder %s174, 0
      %s177 = sadd.s32 %s176, 1
      %s178 = scalar_select %p175, %s176, %s177
      %p181 = pneg %p175
      %p182 = scmp.eq.s32.totalorder %s20, 3
      %p183 = por %p181, %p182
      %p184 = scmp.ne.s32.totalorder %s176, %s179
      %p185 = scmp.eq.s32.totalorder %s20, 0
      %p186 = por %p184, %p185
      %p187 = scmp.ne.s32.totalorder %s176, %s179
      %p188 = scmp.eq.s32.totalorder %s25, 3
      %p189 = por %p187, %p188
      %p190 = scmp.ne.s32.totalorder %s179, %s180
      %p191 = scmp.eq.s32.totalorder %s25, 0
      %p192 = por %p190, %p191
      %p193 = scmp.ne.s32.totalorder %s179, %s180
      %p194 = scmp.eq.s32.totalorder %s26, 3
      %p195 = por %p193, %p194
      %p197 = scmp.ne.s32.totalorder %s180, %s196
      %p198 = scmp.eq.s32.totalorder %s26, 0
      %p199 = por %p197, %p198
      %p200 = scmp.le.s32.totalorder 1, %s20
      %p201 = scmp.lt.s32.totalorder %s20, 5
      %p202 = pnand %p200, %p201
      %p203 = pneg %p202
      // Predicated region
      $region9: #{tpu_custom_call.1} parent=5 // pred_check
        _
      $region10: #{tpu_custom_call.1} parent=5 // pred_check_branch
        %205 = sbr.rel (%p202) target = $region12
      $region11: #{tpu_custom_call.1} parent=5 // pred_region
        %s206 = ssub.s32 %s20, 1
      $region12: #{tpu_custom_call.1} parent=5 // pred_fallthru
        _
      %p207 = scmp.lt.s32.totalorder %s20, 4
      // Predicated region
      $region13: #{tpu_custom_call.1} parent=5 // pred_check
        %p208 = pneg %p207
      $region14: #{tpu_custom_call.1} parent=5 // pred_check_branch
        %210 = sbr.rel (%p208) target = $region16
      $region15: #{tpu_custom_call.1} parent=5 // pred_region
        // Predicated region
        $region17: #{tpu_custom_call.1} parent=15 // pred_check
          %p211 = pneg %p54
        $region18: #{tpu_custom_call.1} parent=15 // pred_check_branch
          %213 = sbr.rel (%p211) target = $region20
        $region19: #{tpu_custom_call.1} parent=15 // pred_region
          %s214 = sand.u32 %s44, 1
          %s215 = scalar_lea.sflag [#allocation4], %s214
          %s216 = sand.u32 %s44, 1
          %s217 = scalar_lea.vmem [#allocation3], %s216
          %s219 = ssub.s32 16, 16
          %220 = vsyncadd %s215, %s219
          %s221 = smul.addr %s27, 2
          %s222 = sadd.s32 %s28, %s221
          %s223 = smul.addr %s222, 16
          %s224 = scalar_lea.hbm %s0, %s223
          %s226 = sshll.u32 %s217, 4
          %s227 = int_to_ptr.vmem [resolvable:$true] %s226
          %229 = dma.hbm_to_vmem [thread:$0]  %s224, 16, %s227, %s215
        $region20: #{tpu_custom_call.1} parent=15 // pred_fallthru
          _
        // Predicated region
        $region21: #{tpu_custom_call.1} parent=15 // pred_check
          %p230 = pneg %p82
        $region22: #{tpu_custom_call.1} parent=15 // pred_check_branch
          %232 = sbr.rel (%p230) target = $region24
        $region23: #{tpu_custom_call.1} parent=15 // pred_region
          %s233 = sand.u32 %s72, 1
          %s234 = scalar_lea.sflag [#allocation7], %s233
          %s235 = sand.u32 %s72, 1
          %s236 = smul.addr %s235, 64
          %s237 = scalar_lea.vmem [#allocation6], %s236
          %s238 = smul.u32 16, %s28
          %s240 = ssub.s32 1024, 1024
          %241 = vsyncadd %s234, %s240
          %s242 = smul.addr %s27, 32
          %s243 = sadd.s32 %s238, %s242
          %s244 = smul.addr %s243, 64
          %s245 = scalar_lea.hbm %s1, %s244
          %s246 = sshll.u32 %s237, 4
          %s247 = int_to_ptr.vmem [resolvable:$true] %s246
          %252 = dma.hbm_to_vmem [thread:$0]  %s245, 1024, %s247, %s234, 64, 64, 4
        $region24: #{tpu_custom_call.1} parent=15 // pred_fallthru
          _
        // Predicated region
        $region25: #{tpu_custom_call.1} parent=15 // pred_check
          %p253 = pneg %p108
        $region26: #{tpu_custom_call.1} parent=15 // pred_check_branch
          %255 = sbr.rel (%p253) target = $region28
        $region27: #{tpu_custom_call.1} parent=15 // pred_region
          %p256 = scmp.lt.s32.totalorder %s27, 1
          %s257 = scalar_select %p256, %s27, 1
          %s258 = scalar_lea.vmem %s2, %s257
        $region28: #{tpu_custom_call.1} parent=15 // pred_fallthru
          _
        // Predicated region
        $region29: #{tpu_custom_call.1} parent=15 // pred_check
          %p259 = pneg %p134
        $region30: #{tpu_custom_call.1} parent=15 // pred_check_branch
          %261 = sbr.rel (%p259) target = $region32
        $region31: #{tpu_custom_call.1} parent=15 // pred_region
          %p262 = scmp.lt.s32.totalorder %s27, 1
          %s263 = scalar_select %p262, %s27, 1
          %s264 = smul.addr %s263, 2
          %s265 = scalar_lea.vmem %s3, %s264
        $region32: #{tpu_custom_call.1} parent=15 // pred_fallthru
          _
        // Predicated region
        $region33: #{tpu_custom_call.1} parent=15 // pred_check
          %p266 = pneg %p160
        $region34: #{tpu_custom_call.1} parent=15 // pred_check_branch
          %268 = sbr.rel (%p266) target = $region36
        $region35: #{tpu_custom_call.1} parent=15 // pred_region
          %p269 = scmp.lt.s32.totalorder %s27, 1
          %s270 = scalar_select %p269, %s27, 1
          %s271 = scalar_lea.vmem %s4, %s270
        $region36: #{tpu_custom_call.1} parent=15 // pred_fallthru
          _
      $region16: #{tpu_custom_call.1} parent=5 // pred_fallthru
        _
      %p272 = scmp.le.s32.totalorder 1, %s20
      %p273 = scmp.lt.s32.totalorder %s20, 5
      %p274 = pnand %p272, %p273
      %p275 = pneg %p274
      // Predicated region
      $region37: #{tpu_custom_call.1} parent=5 // pred_check
        _
      $region38: #{tpu_custom_call.1} parent=5 // pred_check_branch
        %277 = sbr.rel (%p274) target = $region40
      $region39: #{tpu_custom_call.1} parent=5 // pred_region
        %s278 = ssub.s32 %s20, 1
        %s279 = sand.u32 %s47, 1
        %s280 = scalar_lea.sflag [#allocation4], %s279
        %s281 = sand.u32 %s47, 1
        %s282 = scalar_lea.vmem [#allocation3], %s281
        // Predicated region
        $region41: #{tpu_custom_call.1} parent=39 // pred_check
          %p283 = pneg %p60
        $region42: #{tpu_custom_call.1} parent=39 // pred_check_branch
          %285 = sbr.rel (%p283) target = $region44
        $region43: #{tpu_custom_call.1} parent=39 // pred_region
          %286 = dma.done %s280, 16
        $region44: #{tpu_custom_call.1} parent=39 // pred_fallthru
          _
        %s287 = sand.u32 %s75, 1
        %s288 = scalar_lea.sflag [#allocation7], %s287
        %s289 = sand.u32 %s75, 1
        %s290 = smul.addr %s289, 64
        %s291 = scalar_lea.vmem [#allocation6], %s290
        // Predicated region
        $region45: #{tpu_custom_call.1} parent=39 // pred_check
          %p292 = pneg %p88
        $region46: #{tpu_custom_call.1} parent=39 // pred_check_branch
          %294 = sbr.rel (%p292) target = $region48
        $region47: #{tpu_custom_call.1} parent=39 // pred_region
          %295 = dma.done %s288, 1024
        $region48: #{tpu_custom_call.1} parent=39 // pred_fallthru
          _
        %s296 = sand.u32 %s47, 1
        %s297 = scalar_lea.sflag [#allocation4], %s296
        %s298 = sand.u32 %s47, 1
        %s299 = scalar_lea.vmem [#allocation3], %s298
        %p300 = pneg %p60
        %p301 = pneg %p57
        %s302 = sand.u32 %s75, 1
        %s303 = scalar_lea.sflag [#allocation7], %s302
        %s304 = sand.u32 %s75, 1
        %s305 = smul.addr %s304, 64
        %s306 = scalar_lea.vmem [#allocation6], %s305
        %p307 = pneg %p88
        %p308 = pneg %p85
        %p309 = scmp.lt.s32.totalorder %s29, 1
        %s310 = scalar_select %p309, %s29, 1
        %s311 = scalar_lea.vmem %s2, %s310
        %p312 = pneg %p114
        %p313 = pneg %p111
        %p314 = scmp.lt.s32.totalorder %s29, 1
        %s315 = scalar_select %p314, %s29, 1
        %s316 = smul.addr %s315, 2
        %s317 = scalar_lea.vmem %s3, %s316
        %p318 = pneg %p140
        %p319 = pneg %p137
        %p320 = scmp.lt.s32.totalorder %s29, 1
        %s321 = scalar_select %p320, %s29, 1
        %s322 = scalar_lea.vmem %s4, %s321
        %p323 = pneg %p166
        %p324 = pneg %p163
        %p325 = pneg %p192
        %p326 = pneg %p189
        %s327 = sand.u32 %s179, 1
        %s328 = scalar_lea.sflag [#allocation5], %s327
        %s329 = sand.u32 %s179, 1
        %s330 = smul.addr %s329, 2
        %s331 = scalar_lea.vmem [#allocation8], %s330
        %s332 = smul.u32 16, %s30
        %p333 = scmp.lt.s32.totalorder %s29, 1
        %s334 = scalar_select %p333, %s29, 1
        %s335 = scalar_lea.vmem %s2, %s334
        %p336 = scmp.lt.s32.totalorder %s29, 1
        %s337 = scalar_select %p336, %s29, 1
        %s338 = smul.addr %s337, 2
        %s339 = scalar_lea.vmem %s3, %s338
        %p340 = scmp.lt.s32.totalorder %s29, 1
        %s341 = scalar_select %p340, %s29, 1
        %s342 = scalar_lea.vmem %s4, %s341
        %p344 = scmp.eq.s32.totalorder %s30, 0
        // Predicated region
        $region49: #{tpu_custom_call.1} parent=39 // pred_check
          %p345 = pneg %p344
        $region50: #{tpu_custom_call.1} parent=39 // pred_check_branch
          %347 = sbr.rel (%p345) target = $region52
        $region51: #{tpu_custom_call.1} parent=39 // pred_region
          %348 = vst [vmem:[#allocation2] sm:$0x3] 0.0
        $region52: #{tpu_custom_call.1} parent=39 // pred_fallthru
          _
        %v349 = vld [vmem:[#allocation2] sm:$0x3]
        %v350 = vld [vmem:[%s282] sm:$0x1]
        %v351 = vld [vmem:[%s291] sm:$0xf]
        %v352 = vld [vmem:[%s291 + $0x4] sm:$0xf]
        %v353 = vld [vmem:[%s291 + $0x8] sm:$0xf]
        %v354 = vld [vmem:[%s291 + $0xc] sm:$0xf]
        %v355 = vld [vmem:[%s291 + $0x10] sm:$0xf]
        %v356 = vld [vmem:[%s291 + $0x14] sm:$0xf]
        %v357 = vld [vmem:[%s291 + $0x18] sm:$0xf]
        %v358 = vld [vmem:[%s291 + $0x1c] sm:$0xf]
        %v359 = vld [vmem:[%s291 + $0x20] sm:$0xf]
        %v360 = vld [vmem:[%s291 + $0x24] sm:$0xf]
        %v361 = vld [vmem:[%s291 + $0x28] sm:$0xf]
        %v362 = vld [vmem:[%s291 + $0x2c] sm:$0xf]
        %v363 = vld [vmem:[%s291 + $0x30] sm:$0xf]
        %v364 = vld [vmem:[%s291 + $0x34] sm:$0xf]
        %v365 = vld [vmem:[%s291 + $0x38] sm:$0xf]
        %v366 = vld [vmem:[%s291 + $0x3c] sm:$0xf]
        %v383 = vunpack.c.l.b16 %v351
        %v384 = vunpack.c.l.b16 %v352
        %v385 = vunpack.c.l.b16 %v353
        %v386 = vunpack.c.l.b16 %v354
        %v387 = vunpack.c.l.b16 %v355
        %v388 = vunpack.c.l.b16 %v356
        %v389 = vunpack.c.l.b16 %v357
        %v390 = vunpack.c.l.b16 %v358
        %v391 = vunpack.c.l.b16 %v359
        %v392 = vunpack.c.l.b16 %v360
        %v393 = vunpack.c.l.b16 %v361
        %v394 = vunpack.c.l.b16 %v362
        %v395 = vunpack.c.l.b16 %v363
        %v396 = vunpack.c.l.b16 %v364
        %v397 = vunpack.c.l.b16 %v365
        %v398 = vunpack.c.l.b16 %v366
        %v399 = vpack.c.b16 %v384, %v383
        %v400 = vpack.c.b16 %v386, %v385
        %v401 = vpack.c.b16 %v388, %v387
        %v402 = vpack.c.b16 %v390, %v389
        %v403 = vpack.c.b16 %v392, %v391
        %v404 = vpack.c.b16 %v394, %v393
        %v405 = vpack.c.b16 %v396, %v395
        %v406 = vpack.c.b16 %v398, %v397
        %415 = vmatprep.subr.bf16.mxu0 0
        %416 = vmatpush1.bf16.msra.mxu0 %v399
        %417 = vmatprep.subr.bf16.mxu0 0
        %418 = vmatpush1.bf16.msra.mxu0 %v400
        %419 = vmatprep.subr.bf16.mxu0 0
        %420 = vmatpush1.bf16.msra.mxu0 %v401
        %421 = vmatprep.subr.bf16.mxu0 0
        %422 = vmatpush1.bf16.msra.mxu0 %v402
        %423 = vmatprep.subr.bf16.mxu0 0
        %424 = vmatpush1.bf16.msra.mxu0 %v403
        %425 = vmatprep.subr.bf16.mxu0 0
        %426 = vmatpush1.bf16.msra.mxu0 %v404
        %427 = vmatprep.subr.bf16.mxu0 0
        %428 = vmatpush1.bf16.msra.mxu0 %v405
        %429 = vmatprep.subr.bf16.mxu0 0
        %430 = vmatpush1.bf16.msra.mxu0 %v406
        %431 = vmatprep.subr.bf16.mxu0 0
        %432 = vmatpush1.bf16.msra.mxu0 0
        %433 = vmatprep.subr.bf16.mxu0 0
        %434 = vmatpush1.bf16.msra.mxu0 0
        %435 = vmatprep.subr.bf16.mxu0 0
        %436 = vmatpush1.bf16.msra.mxu0 0
        %437 = vmatprep.subr.bf16.mxu0 0
        %438 = vmatpush1.bf16.msra.mxu0 0
        %439 = vmatprep.subr.bf16.mxu0 0
        %440 = vmatpush1.bf16.msra.mxu0 0
        %441 = vmatprep.subr.bf16.mxu0 0
        %442 = vmatpush1.bf16.msra.mxu0 0
        %443 = vmatprep.subr.bf16.mxu0 0
        %444 = vmatpush1.bf16.msra.mxu0 0
        %445 = vmatprep.subr.bf16.mxu0 0
        %446 = vmatpush1.bf16.msra.mxu0 0
        %447 = vmatprep.mubr.bf16.mxu0 0
        %448 = vmatmul.mubr.bf16.gmra.mrb[0].mxu0 %v350
        %v449 = vpop.f32.mrb[0].mxu0
        %v450 = vadd.f32 0.0, %v449
        %v451 = vpop.f32.mrb[0].mxu0
        %v452 = vpop.f32.mrb[0].mxu0
        %v453 = vpop.f32.mrb[0].mxu0
        %454 = vdwg.mxu0
        %v455 = vadd.f32 %v349, %v450
        %456 = vst [vmem:[#allocation2] sm:$0x3] %v455
        %p457 = scmp.eq.s32.totalorder %s30, 1
        // Predicated region
        $region53: #{tpu_custom_call.1} parent=39 // pred_check
          %p458 = pneg %p457
        $region54: #{tpu_custom_call.1} parent=39 // pred_check_branch
          %460 = sbr.rel (%p458) target = $region56
        $region55: #{tpu_custom_call.1} parent=39 // pred_region
          %v461 = vld [vmem:[#allocation2] sm:$0x3]
          %v462 = vld [vmem:[%s335] sm:$0x1]
          %v464 = vlaneseq
          %v465 = vshrl.u32 %v464, 7
          %v466 = vsub.s32 0, %v465
          %v467 = vrot.slane %v462, %v466
          %v469 = vadd.f32 %v461, %v467
          %v470 = vmax.f32 %v469, 0.0
          %v471 = vld [vmem:[%s339] sm:$0x3]
          %v472 = vlaneseq
          %v473 = vshrl.u32 %v472, 7
          %v474 = vsub.s32 0, %v473
          %v475 = vrot.slane %v471, %v474
          %v476 = vmul.f32 %v470, %v475
          %vm477 = vcmask 1041408
          %v478 = vsel %vm477, %v476, 0.0
          %479 = vadd.xlane.f32.xlu0 %v478
          %v480 = vpop.xlane.xlu0 %479
          %v481 = vlaneseq
          %v482 = vshrl.u32 %v481, 7
          %v483 = vsub.s32 1, %v482
          %v484 = vrot.slane %v471, %v483
          %v485 = vmul.f32 %v470, %v484
          %v486 = vsel %vm477, %v485, 0.0
          %487 = vadd.xlane.f32.xlu0 %v486
          %v488 = vpop.xlane.xlu0 %487
          %vm489 = vcmask 7168
          %v490 = vsel %vm489, %v480, %v488
          %v491 = vld [vmem:[%s342] sm:$0x1]
          %v493 = vlaneseq
          %v494 = vshrl.u32 %v493, 7
          %v495 = vsub.s32 0, %v494
          %v496 = vrot.slane %v491, %v495
          %v498 = vadd.f32 %v490, %v496
          %vm499 = vcmask 9216
          %500 = vst.msk [vmem:[%s331] sm:$0x3] %vm499, %v498
        $region56: #{tpu_custom_call.1} parent=39 // pred_fallthru
          _
        %s501 = sand.u32 %s179, 1
        %s502 = scalar_lea.sflag [#allocation5], %s501
        %s503 = sand.u32 %s179, 1
        %s504 = smul.addr %s503, 2
        %s505 = scalar_lea.vmem [#allocation8], %s504
        // Predicated region
        $region57: #{tpu_custom_call.1} parent=39 // pred_check
          %p506 = pneg %p189
        $region58: #{tpu_custom_call.1} parent=39 // pred_check_branch
          %508 = sbr.rel (%p506) target = $region60
        $region59: #{tpu_custom_call.1} parent=39 // pred_region
          %s510 = ssub.s32 32, 32
          %511 = vsyncadd %s502, %s510
          %s512 = smul.addr %s29, 32
          %s513 = scalar_lea.hbm %s5, %s512
          %s515 = sshll.u32 %s505, 4
          %s516 = int_to_ptr.vmem [resolvable:$true] %s515
          %518 = dma.vmem_to_hbm [thread:$0]  %s516, 32, %s513, %s502
        $region60: #{tpu_custom_call.1} parent=39 // pred_fallthru
          _
      $region40: #{tpu_custom_call.1} parent=5 // pred_fallthru
        _
      %p519 = scmp.le.s32.totalorder 2, %s20
      // Predicated region
      $region61: #{tpu_custom_call.1} parent=5 // pred_check
        %p520 = pneg %p519
      $region62: #{tpu_custom_call.1} parent=5 // pred_check_branch
        %522 = sbr.rel (%p520) target = $region64
      $region63: #{tpu_custom_call.1} parent=5 // pred_region
        %s523 = ssub.s32 %s20, 2
        // Predicated region
        $region65: #{tpu_custom_call.1} parent=63 // pred_check
          %p524 = pneg %p195
        $region66: #{tpu_custom_call.1} parent=63 // pred_check_branch
          %526 = sbr.rel (%p524) target = $region68
        $region67: #{tpu_custom_call.1} parent=63 // pred_region
          %s527 = sand.u32 %s180, 1
          %s528 = scalar_lea.sflag [#allocation5], %s527
          %s529 = sand.u32 %s180, 1
          %s530 = smul.addr %s529, 2
          %s531 = scalar_lea.vmem [#allocation8], %s530
          %532 = dma.done %s528, 32
        $region68: #{tpu_custom_call.1} parent=63 // pred_fallthru
          _
      $region64: #{tpu_custom_call.1} parent=5 // pred_fallthru
        _
    $region6: #{tpu_custom_call.1} parent=1 // loop_footer
      %s24 = sadd.s32 1, %s20
    $region7: #{tpu_custom_call.1} parent=1 // loop_footer_branch
      %19 = sbr.rel target = $region3
    $region8: #{tpu_custom_call.1} parent=1 // loop_exit
      _
    %533 = vsyncpa [#allocation4], 1
    %s534 = scalar_lea.sflag [#allocation4], 1
    %535 = vsyncpa %s534, 1
    %536 = vsyncpa [#allocation7], 1
    %s537 = scalar_lea.sflag [#allocation7], 1
    %538 = vsyncpa %s537, 1
    %539 = vsyncpa [#allocation5], 1
    %s540 = scalar_lea.sflag [#allocation5], 1
    %541 = vsyncpa %s540, 1

</llo_original>
